<compile_context>
chip_gen: v7x
topology: tpu7x:2x2x1
jax: 0.10.0
libtpu: 0.0.40
codegen_flags: <defaults>
</compile_context>

<pallas_src>
import jax
import jax.numpy as jnp
from jax.experimental import pallas as pl
from jax.experimental.pallas import tpu as pltpu


# Row layout of the packed parameter slab (16 sublanes x 128 lanes, f32).
_W1_ROW = 0     # rows 0..1  : w1 (2,5)  in lanes 0..4
_B1_ROW = 2     # row  2     : b1 (1,5)
_W2_ROW = 3     # rows 3..7  : w2 (5,4)  in lanes 0..3
_B2_ROW = 8     # row  8     : b2 (1,4)
_W3_ROW = 9     # rows 9..12 : w3 (4,1)  in lane 0
_B3_ROW = 13    # row 13     : b3 (1,1)
_SLAB_ROWS = 16
_SLAB_LANES = 128


def xor_mlp_kernel(x_ref, p_ref, o_ref):
    """x_ref: (B,2) f32, p_ref: (16,128) packed params, o_ref: (B,128) f32."""
    x = x_ref[...]                                   # (B, 2)
    p = p_ref[...]                                   # (16, 128)

    # ---- layer 1: tanh(x @ w1 + b1) -> (B, 5), as VPU madds ----------------
    z1 = p[_B1_ROW:_B1_ROW + 1, 0:5]                 # bias (1,5)
    z1 = z1 + x[:, 0:1] * p[_W1_ROW + 0:_W1_ROW + 1, 0:5]
    z1 = z1 + x[:, 1:2] * p[_W1_ROW + 1:_W1_ROW + 2, 0:5]
    h1 = jnp.tanh(z1)                                # (B, 5), EUP

    # ---- layer 2: tanh(h1 @ w2 + b2) -> (B, 4) -----------------------------
    z2 = p[_B2_ROW:_B2_ROW + 1, 0:4]                 # bias (1,4)
    for k in range(5):                               # unrolled at trace time
        z2 = z2 + h1[:, k:k + 1] * p[_W2_ROW + k:_W2_ROW + k + 1, 0:4]
    h2 = jnp.tanh(z2)                                # (B, 4)

    # ---- layer 3: h2 @ w3 + b3 -> (B, 1) -----------------------------------
    z3 = p[_B3_ROW:_B3_ROW + 1, 0:1]                 # bias (1,1)
    for k in range(4):
        z3 = z3 + h2[:, k:k + 1] * p[_W3_ROW + k:_W3_ROW + k + 1, 0:1]

    # Lane-dense store: replicate the logit across all 128 lanes so the store
    # is one full unmasked vst; the wrapper slices lane 0 back off.
    o_ref[...] = jnp.broadcast_to(z3, o_ref.shape)


def pack_params(params):
    """Pack all weights/biases into a single (16,128) f32 VMEM slab (built once)."""
    slab = jnp.zeros((_SLAB_ROWS, _SLAB_LANES), jnp.float32)
    slab = slab.at[_W1_ROW:_W1_ROW + 2, 0:5].set(params["w1"])
    slab = slab.at[_B1_ROW:_B1_ROW + 1, 0:5].set(params["b1"])
    slab = slab.at[_W2_ROW:_W2_ROW + 5, 0:4].set(params["w2"])
    slab = slab.at[_B2_ROW:_B2_ROW + 1, 0:4].set(params["b2"])
    slab = slab.at[_W3_ROW:_W3_ROW + 4, 0:1].set(params["w3"])
    slab = slab.at[_B3_ROW:_B3_ROW + 1, 0:1].set(params["b3"])
    return slab


def xor_forward(x, params):
    """x: (B, 2) float32. Returns (B, 1) logits, identical math to the torch module."""
    B = x.shape[0]
    slab = pack_params(params)
    vmem = pl.BlockSpec(memory_space=pltpu.MemorySpace.VMEM)
    out_padded = pl.pallas_call(
        xor_mlp_kernel,
        out_shape=jax.ShapeDtypeStruct((B, _SLAB_LANES), jnp.float32),
        in_specs=[vmem, vmem],
        out_specs=vmem,
    )(x, slab)
    return out_padded[:, :1]


def init_params(key, input_dim=2, output_dim=1):
    """Deterministic init mimicking torch.nn.Linear (U[-1/sqrt(fan_in), 1/sqrt(fan_in)]).

    Weights are stored transposed vs PyTorch, i.e. (in_features, out_features),
    so the forward pass computes y = x @ W + b (same math as x @ weight.T + bias).
    """
    dims = [(input_dim, 5), (5, 4), (4, output_dim)]
    params = {}
    for idx, (fan_in, fan_out) in enumerate(dims, start=1):
        key, kw, kb = jax.random.split(key, 3)
        bound = 1.0 / jnp.sqrt(jnp.float32(fan_in))
        params[f"w{idx}"] = jax.random.uniform(
            kw, (fan_in, fan_out), jnp.float32, -bound, bound
        )
        params[f"b{idx}"] = jax.random.uniform(
            kb, (1, fan_out), jnp.float32, -bound, bound
        )
    return params


def reference_forward(x, p):
    h1 = jnp.tanh(x @ p["w1"] + p["b1"])
    h2 = jnp.tanh(h1 @ p["w2"] + p["b2"])
    return h2 @ p["w3"] + p["b3"]


if __name__ == "__main__":
    key = jax.random.PRNGKey(0)
    params = init_params(key, input_dim=2, output_dim=1)

    # XOR truth table plus a few random points: batch = 8, features = 2.
    truth = jnp.array([[0.0, 0.0], [0.0, 1.0], [1.0, 0.0], [1.0, 1.0]], jnp.float32)
    key, kx = jax.random.split(key)
    rand = jax.random.uniform(kx, (4, 2), jnp.float32)
    x = jnp.concatenate([truth, rand], axis=0)  # (8, 2)

    out = jax.block_until_ready(xor_forward(x, params))

    ref = reference_forward(x, params)
    assert out.shape == (8, 1)
    assert jnp.allclose(out, ref, atol=1e-5, rtol=1e-5)

    print("KERNEL_OK")
</pallas_src>

<mosaic_0001>
module attributes {stable_mosaic.version = 11 : i64} {
  func.func @xor_mlp_kernel(%arg0: memref<8x2xf32, #tpu.memory_space<vmem>>, %arg1: memref<16x128xf32, #tpu.memory_space<vmem>>, %arg2: memref<8x128xf32, #tpu.memory_space<vmem>>) attributes {dimension_semantics = [], scalar_prefetch = 0 : i64, scratch_operands = 0 : i64, tpu.core_type = #tpu.core_type<tc>} {
    %c0 = arith.constant 0 : index
    %c0_0 = arith.constant 0 : index
    %0 = vector.load %arg0[%c0, %c0_0] : memref<8x2xf32, #tpu.memory_space<vmem>>, vector<8x2xf32>
    %c0_1 = arith.constant 0 : index
    %c0_2 = arith.constant 0 : index
    %1 = vector.load %arg1[%c0_1, %c0_2] : memref<16x128xf32, #tpu.memory_space<vmem>>, vector<16x128xf32>
    %2 = vector.extract_strided_slice %1 {offsets = [2, 0], sizes = [1, 5], strides = [1, 1]} : vector<16x128xf32> to vector<1x5xf32>
    %3 = vector.extract_strided_slice %0 {offsets = [0, 0], sizes = [8, 1], strides = [1, 1]} : vector<8x2xf32> to vector<8x1xf32>
    %4 = vector.extract_strided_slice %1 {offsets = [0, 0], sizes = [1, 5], strides = [1, 1]} : vector<16x128xf32> to vector<1x5xf32>
    %5 = vector.broadcast %3 : vector<8x1xf32> to vector<8x5xf32>
    %6 = vector.broadcast %4 : vector<1x5xf32> to vector<8x5xf32>
    %7 = arith.mulf %5, %6 : vector<8x5xf32>
    %8 = vector.broadcast %2 : vector<1x5xf32> to vector<8x5xf32>
    %9 = arith.addf %8, %7 : vector<8x5xf32>
    %10 = vector.extract_strided_slice %0 {offsets = [0, 1], sizes = [8, 1], strides = [1, 1]} : vector<8x2xf32> to vector<8x1xf32>
    %11 = vector.extract_strided_slice %1 {offsets = [1, 0], sizes = [1, 5], strides = [1, 1]} : vector<16x128xf32> to vector<1x5xf32>
    %12 = vector.broadcast %10 : vector<8x1xf32> to vector<8x5xf32>
    %13 = vector.broadcast %11 : vector<1x5xf32> to vector<8x5xf32>
    %14 = arith.mulf %12, %13 : vector<8x5xf32>
    %15 = arith.addf %9, %14 : vector<8x5xf32>
    %16 = math.tanh %15 : vector<8x5xf32>
    %17 = vector.extract_strided_slice %1 {offsets = [8, 0], sizes = [1, 4], strides = [1, 1]} : vector<16x128xf32> to vector<1x4xf32>
    %18 = vector.extract_strided_slice %16 {offsets = [0, 0], sizes = [8, 1], strides = [1, 1]} : vector<8x5xf32> to vector<8x1xf32>
    %19 = vector.extract_strided_slice %1 {offsets = [3, 0], sizes = [1, 4], strides = [1, 1]} : vector<16x128xf32> to vector<1x4xf32>
    %20 = vector.broadcast %18 : vector<8x1xf32> to vector<8x4xf32>
    %21 = vector.broadcast %19 : vector<1x4xf32> to vector<8x4xf32>
    %22 = arith.mulf %20, %21 : vector<8x4xf32>
    %23 = vector.broadcast %17 : vector<1x4xf32> to vector<8x4xf32>
    %24 = arith.addf %23, %22 : vector<8x4xf32>
    %25 = vector.extract_strided_slice %16 {offsets = [0, 1], sizes = [8, 1], strides = [1, 1]} : vector<8x5xf32> to vector<8x1xf32>
    %26 = vector.extract_strided_slice %1 {offsets = [4, 0], sizes = [1, 4], strides = [1, 1]} : vector<16x128xf32> to vector<1x4xf32>
    %27 = vector.broadcast %25 : vector<8x1xf32> to vector<8x4xf32>
    %28 = vector.broadcast %26 : vector<1x4xf32> to vector<8x4xf32>
    %29 = arith.mulf %27, %28 : vector<8x4xf32>
    %30 = arith.addf %24, %29 : vector<8x4xf32>
    %31 = vector.extract_strided_slice %16 {offsets = [0, 2], sizes = [8, 1], strides = [1, 1]} : vector<8x5xf32> to vector<8x1xf32>
    %32 = vector.extract_strided_slice %1 {offsets = [5, 0], sizes = [1, 4], strides = [1, 1]} : vector<16x128xf32> to vector<1x4xf32>
    %33 = vector.broadcast %31 : vector<8x1xf32> to vector<8x4xf32>
    %34 = vector.broadcast %32 : vector<1x4xf32> to vector<8x4xf32>
    %35 = arith.mulf %33, %34 : vector<8x4xf32>
    %36 = arith.addf %30, %35 : vector<8x4xf32>
    %37 = vector.extract_strided_slice %16 {offsets = [0, 3], sizes = [8, 1], strides = [1, 1]} : vector<8x5xf32> to vector<8x1xf32>
    %38 = vector.extract_strided_slice %1 {offsets = [6, 0], sizes = [1, 4], strides = [1, 1]} : vector<16x128xf32> to vector<1x4xf32>
    %39 = vector.broadcast %37 : vector<8x1xf32> to vector<8x4xf32>
    %40 = vector.broadcast %38 : vector<1x4xf32> to vector<8x4xf32>
    %41 = arith.mulf %39, %40 : vector<8x4xf32>
    %42 = arith.addf %36, %41 : vector<8x4xf32>
    %43 = vector.extract_strided_slice %16 {offsets = [0, 4], sizes = [8, 1], strides = [1, 1]} : vector<8x5xf32> to vector<8x1xf32>
    %44 = vector.extract_strided_slice %1 {offsets = [7, 0], sizes = [1, 4], strides = [1, 1]} : vector<16x128xf32> to vector<1x4xf32>
    %45 = vector.broadcast %43 : vector<8x1xf32> to vector<8x4xf32>
    %46 = vector.broadcast %44 : vector<1x4xf32> to vector<8x4xf32>
    %47 = arith.mulf %45, %46 : vector<8x4xf32>
    %48 = arith.addf %42, %47 : vector<8x4xf32>
    %49 = math.tanh %48 : vector<8x4xf32>
    %50 = vector.extract_strided_slice %1 {offsets = [13, 0], sizes = [1, 1], strides = [1, 1]} : vector<16x128xf32> to vector<1x1xf32>
    %51 = vector.extract_strided_slice %49 {offsets = [0, 0], sizes = [8, 1], strides = [1, 1]} : vector<8x4xf32> to vector<8x1xf32>
    %52 = vector.extract_strided_slice %1 {offsets = [9, 0], sizes = [1, 1], strides = [1, 1]} : vector<16x128xf32> to vector<1x1xf32>
    %53 = vector.broadcast %52 : vector<1x1xf32> to vector<8x1xf32>
    %54 = arith.mulf %51, %53 : vector<8x1xf32>
    %55 = vector.broadcast %50 : vector<1x1xf32> to vector<8x1xf32>
    %56 = arith.addf %55, %54 : vector<8x1xf32>
    %57 = vector.extract_strided_slice %49 {offsets = [0, 1], sizes = [8, 1], strides = [1, 1]} : vector<8x4xf32> to vector<8x1xf32>
    %58 = vector.extract_strided_slice %1 {offsets = [10, 0], sizes = [1, 1], strides = [1, 1]} : vector<16x128xf32> to vector<1x1xf32>
    %59 = vector.broadcast %58 : vector<1x1xf32> to vector<8x1xf32>
    %60 = arith.mulf %57, %59 : vector<8x1xf32>
    %61 = arith.addf %56, %60 : vector<8x1xf32>
    %62 = vector.extract_strided_slice %49 {offsets = [0, 2], sizes = [8, 1], strides = [1, 1]} : vector<8x4xf32> to vector<8x1xf32>
    %63 = vector.extract_strided_slice %1 {offsets = [11, 0], sizes = [1, 1], strides = [1, 1]} : vector<16x128xf32> to vector<1x1xf32>
    %64 = vector.broadcast %63 : vector<1x1xf32> to vector<8x1xf32>
    %65 = arith.mulf %62, %64 : vector<8x1xf32>
    %66 = arith.addf %61, %65 : vector<8x1xf32>
    %67 = vector.extract_strided_slice %49 {offsets = [0, 3], sizes = [8, 1], strides = [1, 1]} : vector<8x4xf32> to vector<8x1xf32>
    %68 = vector.extract_strided_slice %1 {offsets = [12, 0], sizes = [1, 1], strides = [1, 1]} : vector<16x128xf32> to vector<1x1xf32>
    %69 = vector.broadcast %68 : vector<1x1xf32> to vector<8x1xf32>
    %70 = arith.mulf %67, %69 : vector<8x1xf32>
    %71 = arith.addf %66, %70 : vector<8x1xf32>
    %72 = vector.shape_cast %71 : vector<8x1xf32> to vector<8x1xf32>
    %73 = vector.broadcast %72 : vector<8x1xf32> to vector<8x128xf32>
    %c0_3 = arith.constant 0 : index
    %c0_4 = arith.constant 0 : index
    %74 = vector.load %arg2[%c0_3, %c0_4] : memref<8x128xf32, #tpu.memory_space<vmem>>, vector<8x128xf32>
    tpu.vector_store %arg2[%c0_3, %c0_4], %73 {strides = array<i32>} : memref<8x128xf32, #tpu.memory_space<vmem>>, vector<8x128xf32>,
    return
  }
}

</mosaic_0001>

<llo_original>
// kernel: tpu_custom_call.1
$region0: #{tpu_custom_call.1}
  #allocation0 [shape = 'u32[]', space=smem, size = 0x4, offset = 0x4, fixed_abs, tag = 'smem constant byte address 0x4 - core index']
  #allocation1 [shape = 'u32[144,128]{1,0:T(1,128)}', space=vmem, size = 0x12000, scoped, tag = 'internal scratch']
  %s0 = inlined_call_operand.vmem [shape: f32[8,2], index: 0, kind: input, shape index: {}]
  %s1 = inlined_call_operand.hbm [shape: f32[16,128], index: 1, kind: input, shape index: {}]
  %s2 = inlined_call_operand.hbm [shape: f32[8,128], index: 2, kind: output, shape index: {}]
  %s3 = sld [smem:[#allocation0]]
  $region22: #{tpu_custom_call.1} parent=0
    _
  %s5 = ssub.s32 1, %s3
  %s6 = scalar_select 0, %s5, %s3
  $region1: #{tpu_custom_call.1} parent=0
    #allocation2 [shape = 'u8[8192]{0}', space=vmem, size = 0x2000, scoped, tag = 'input window, operand 1, single buffered']
    #allocation3 [shape = 's32[1]{0}', space=sflag, size = 0x4, scoped, tag = 'scoped memory for tpu_custom_call.1']
    #allocation4 [shape = 's32[1]{0}', space=sflag, size = 0x4, scoped, tag = 'scoped memory for tpu_custom_call.1']
    #allocation5 [shape = 'u8[4096]{0}', space=vmem, size = 0x1000, scoped, tag = 'output window, operand 0, single buffered']
    %7 = vsyncpa [#allocation3], 0
    %8 = vsyncpa [#allocation4], 0
    // Predicated region
    $region2: #{tpu_custom_call.1} parent=1 // pred_check
      _
    $region3: #{tpu_custom_call.1} parent=1 // pred_check_branch
      %10 = sbr.rel (0) target = $region5
    $region4: #{tpu_custom_call.1} parent=1 // pred_region
      _
    $region5: #{tpu_custom_call.1} parent=1 // pred_fallthru
      _
    // Predicated region
    $region6: #{tpu_custom_call.1} parent=1 // pred_check
      _
    $region7: #{tpu_custom_call.1} parent=1 // pred_check_branch
      %12 = sbr.rel (0) target = $region9
    $region8: #{tpu_custom_call.1} parent=1 // pred_region
      %s14 = ssub.s32 256, 256
      %15 = vsyncadd [#allocation3], %s14
      %s16 = sshll.u32 [#allocation2], 4
      %s17 = int_to_ptr.vmem [resolvable:$true] %s16
      %22 = dma.hbm_to_vmem [thread:$0]  %s1, 256, %s17, [#allocation3], 128, 128, 8
    $region9: #{tpu_custom_call.1} parent=1 // pred_fallthru
      _
    // Predicated region
    $region10: #{tpu_custom_call.1} parent=1 // pred_check
      _
    $region11: #{tpu_custom_call.1} parent=1 // pred_check_branch
      %24 = sbr.rel (0) target = $region13
    $region12: #{tpu_custom_call.1} parent=1 // pred_region
      %25 = dma.done [#allocation3], 256
    $region13: #{tpu_custom_call.1} parent=1 // pred_fallthru
      _
    %v26 = vld [vmem:[%s0] sm:$0xff]
    %v27 = vld [vmem:[#allocation2] sm:$0xff]
    %v28 = vld [vmem:[#allocation2 + $0x8] sm:$0xff]
    %30 = vset.pattern.permute.xlu0 0
    %31 = vperm.xlu0 %30, %v26
    %v32 = vpop.permute.xlu0 %31
    %v34 = vlaneseq
    %v35 = vshrl.u32 %v34, 7
    %v36 = vsub.s32 0, %v35
    %v37 = vrot.slane %v27, %v36
    %v38 = vmul.f32 %v32, %v37
    %v39 = vlaneseq
    %v40 = vshrl.u32 %v39, 7
    %v41 = vsub.s32 2, %v40
    %v42 = vrot.slane %v27, %v41
    %v43 = vadd.f32 %v42, %v38
    %44 = vset.pattern.permute.xlu0 1
    %45 = vperm.xlu0 %44, %v26
    %v46 = vpop.permute.xlu0 %45
    %v48 = vlaneseq
    %v49 = vshrl.u32 %v48, 7
    %v50 = vsub.s32 1, %v49
    %v51 = vrot.slane %v27, %v50
    %v52 = vmul.f32 %v46, %v51
    %v53 = vadd.f32 %v43, %v52
    %v54 = vtanh.pop %v53
    %56 = vset.pattern.permute.xlu0 0
    %57 = vperm.xlu0 %56, %v54
    %v58 = vpop.permute.xlu0 %57
    %v60 = vlaneseq
    %v61 = vshrl.u32 %v60, 7
    %v62 = vsub.s32 3, %v61
    %v63 = vrot.slane %v27, %v62
    %v64 = vmul.f32 %v58, %v63
    %v65 = vlaneseq
    %v66 = vshrl.u32 %v65, 7
    %v67 = vsub.s32 0, %v66
    %v68 = vrot.slane %v28, %v67
    %v69 = vadd.f32 %v68, %v64
    %70 = vset.pattern.permute.xlu0 1
    %71 = vperm.xlu0 %70, %v54
    %v72 = vpop.permute.xlu0 %71
    %v74 = vlaneseq
    %v75 = vshrl.u32 %v74, 7
    %v76 = vsub.s32 4, %v75
    %v77 = vrot.slane %v27, %v76
    %v78 = vmul.f32 %v72, %v77
    %v79 = vadd.f32 %v69, %v78
    %80 = vset.pattern.permute.xlu0 2
    %81 = vperm.xlu0 %80, %v54
    %v82 = vpop.permute.xlu0 %81
    %v84 = vlaneseq
    %v85 = vshrl.u32 %v84, 7
    %v86 = vsub.s32 5, %v85
    %v87 = vrot.slane %v27, %v86
    %v88 = vmul.f32 %v82, %v87
    %v89 = vadd.f32 %v79, %v88
    %90 = vset.pattern.permute.xlu0 3
    %91 = vperm.xlu0 %90, %v54
    %v92 = vpop.permute.xlu0 %91
    %v94 = vlaneseq
    %v95 = vshrl.u32 %v94, 7
    %v96 = vsub.s32 6, %v95
    %v97 = vrot.slane %v27, %v96
    %v98 = vmul.f32 %v92, %v97
    %v99 = vadd.f32 %v89, %v98
    %100 = vset.pattern.permute.xlu0 4
    %101 = vperm.xlu0 %100, %v54
    %v102 = vpop.permute.xlu0 %101
    %v104 = vlaneseq
    %v105 = vshrl.u32 %v104, 7
    %v106 = vsub.s32 7, %v105
    %v107 = vrot.slane %v27, %v106
    %v108 = vmul.f32 %v102, %v107
    %v109 = vadd.f32 %v99, %v108
    %v110 = vtanh.pop %v109
    %v111 = vlaneseq
    %v112 = vshrl.u32 %v111, 7
    %v113 = vsub.s32 1, %v112
    %v114 = vrot.slane %v28, %v113
    %v115 = vmul.f32 %v110, %v114
    %v116 = vlaneseq
    %v117 = vshrl.u32 %v116, 7
    %v118 = vsub.s32 5, %v117
    %v119 = vrot.slane %v28, %v118
    %v120 = vadd.f32 %v119, %v115
    %v121 = vlaneseq
    %v122 = vshrl.u32 %v121, 7
    %v123 = vsub.s32 2, %v122
    %v124 = vrot.slane %v28, %v123
    %126 = vrot.lane.b32.xlu0 %v124, 1
    %v127 = vpop.permute.xlu0 %126
    %v129 = vmul.f32 %v110, %v127
    %131 = vrot.lane.b32.xlu0 %v129, 127
    %v132 = vpop.permute.xlu0 %131
    %v134 = vadd.f32 %v120, %v132
    %v135 = vlaneseq
    %v136 = vshrl.u32 %v135, 7
    %v137 = vsub.s32 3, %v136
    %v138 = vrot.slane %v28, %v137
    %140 = vrot.lane.b32.xlu0 %v138, 2
    %v141 = vpop.permute.xlu0 %140
    %v143 = vmul.f32 %v110, %v141
    %145 = vrot.lane.b32.xlu0 %v143, 126
    %v146 = vpop.permute.xlu0 %145
    %v148 = vadd.f32 %v134, %v146
    %v149 = vlaneseq
    %v150 = vshrl.u32 %v149, 7
    %v151 = vsub.s32 4, %v150
    %v152 = vrot.slane %v28, %v151
    %154 = vrot.lane.b32.xlu0 %v152, 3
    %v155 = vpop.permute.xlu0 %154
    %v157 = vmul.f32 %v110, %v155
    %159 = vrot.lane.b32.xlu0 %v157, 125
    %v160 = vpop.permute.xlu0 %159
    %v162 = vadd.f32 %v148, %v160
    %164 = vset.pattern.permute.xlu0 0
    %165 = vperm.xlu0 %164, %v162
    %v166 = vpop.permute.xlu0 %165
    %168 = vst [vmem:[#allocation5] sm:$0xff] %v166
    // Predicated region
    $region14: #{tpu_custom_call.1} parent=1 // pred_check
      _
    $region15: #{tpu_custom_call.1} parent=1 // pred_check_branch
      %170 = sbr.rel (0) target = $region17
    $region16: #{tpu_custom_call.1} parent=1 // pred_region
      %s172 = ssub.s32 128, 128
      %173 = vsyncadd [#allocation4], %s172
      %s175 = sshll.u32 [#allocation5], 4
      %s176 = int_to_ptr.vmem [resolvable:$true] %s175
      %178 = dma.vmem_to_hbm [thread:$0]  %s176, 128, %s2, [#allocation4]
    $region17: #{tpu_custom_call.1} parent=1 // pred_fallthru
      _
    // Predicated region
    $region18: #{tpu_custom_call.1} parent=1 // pred_check
      _
    $region19: #{tpu_custom_call.1} parent=1 // pred_check_branch
      %180 = sbr.rel (0) target = $region21
    $region20: #{tpu_custom_call.1} parent=1 // pred_region
      %181 = dma.done [#allocation4], 128
    $region21: #{tpu_custom_call.1} parent=1 // pred_fallthru
      _
    %182 = vsyncpa [#allocation3], 1
    %183 = vsyncpa [#allocation4], 1

</llo_original>
